<compile_context>
chip_gen: v7x
topology: tpu7x:2x2x1
jax: 0.10.0
libtpu: 0.0.40
codegen_flags: <defaults>
</compile_context>

<pallas_src>
import functools

import jax
import jax.numpy as jnp
from jax.experimental import pallas as pl
from jax.experimental.pallas import tpu as pltpu

LANE = 128
SUBLANE_BF16 = 16          # bf16 packs 16 rows per vreg sublane group
NEG_SLOPE = 0.01           # PyTorch LeakyReLU default


def _round_up(x, m):
    return ((x + m - 1) // m) * m


# ---------------------------------------------------------------------------
# Fused encoder kernel: conv stack + LeakyReLU + max-over-time + Linear.
# One grid step handles TB batch elements; intermediates stay in VMEM (bf16).
# ---------------------------------------------------------------------------
def _fused_encoder_kernel(x_ref, *refs, layers, L, OFF, Lp, TB, n_bufs,
                          neg_slope):
    # layers: tuple of (K, cin, cout, left) per conv layer (real widths).
    n_layers = len(layers)
    conv_refs = refs[:2 * n_layers]
    wff_ref = refs[2 * n_layers]
    bff_ref = refs[2 * n_layers + 1]
    o_ref = refs[2 * n_layers + 2]
    act_bufs = refs[2 * n_layers + 3:]
    assert len(act_bufs) == n_bufs

    # Zero ONLY the halo rows (a handful of sublane-aligned rows) each step.
    # Interior rows are fully overwritten by the staging / layer stores, so
    # this is all that 'same' padding needs.
    tail = Lp - OFF - L
    for buf in act_bufs:
        c_scr = buf.shape[-1]
        if OFF > 0:
            buf[:, :OFF, :] = jnp.zeros((TB, OFF, c_scr), buf.dtype)
        if tail > 0:
            buf[:, OFF + L:, :] = jnp.zeros((TB, tail, c_scr), buf.dtype)

    # Stage the input tile into the interior rows of buffer A (bf16).
    cin0 = layers[0][1]
    src = act_bufs[0]
    src[:, OFF:OFF + L, :cin0] = x_ref[...].astype(src.dtype)
    dst = act_bufs[1] if n_bufs == 2 else None

    for li, (K, cin, cout, left) in enumerate(layers):
        w_ref = conv_refs[2 * li]      # (K, cin, cout) bf16
        b_ref = conv_refs[2 * li + 1]  # (1, cout) f32

        acc = jnp.zeros((TB * L, cout), jnp.float32)
        for j in range(K):             # static unrolled tap loop
            s = OFF - left + j         # halo rows are zero => 'same' padding
            xj = src[:, s:s + L, :cin].reshape(TB * L, cin)   # bf16, no cast
            acc = acc + jnp.dot(xj, w_ref[j],
                                preferred_element_type=jnp.float32)
        acc = acc + b_ref[...]                         # f32 bias
        y = jnp.where(acc >= 0, acc, neg_slope * acc)  # f32 LeakyReLU

        if li == n_layers - 1:
            # Fused epilogue: max over time directly on the live f32
            # activation (no store + reload), then the FF matmul.
            pooled = jnp.max(y.reshape(TB, L, cout), axis=1)    # (TB, cout)
            out = jnp.dot(pooled.astype(jnp.bfloat16), wff_ref[...],
                          preferred_element_type=jnp.float32)
            o_ref[...] = (out + bff_ref[...]).astype(o_ref.dtype)
        else:
            dst[:, OFF:OFF + L, :cout] = (
                y.reshape(TB, L, cout).astype(dst.dtype))
            src, dst = dst, src


# ---------------------------------------------------------------------------
# Wrapper: casts the (tiny) parameters once and launches the fused kernel.
# ---------------------------------------------------------------------------
def conv_encoder_forward(x_ncl, params, *, tb=8, neg_slope=NEG_SLOPE):
    """x_ncl: (B, d_input, L) as in PyTorch NCL; returns (B, d_model)."""
    x = jnp.transpose(x_ncl, (0, 2, 1))                # (B, L, Cin) chan-last
    B, L, cin0 = x.shape

    # --- static per-layer configuration (real channel widths) ---------------
    layer_cfg = []
    c_in = cin0
    for (w, _b) in params["convs"]:
        K, wc_in, c_out = w.shape
        assert wc_in == c_in
        left = (K - 1) // 2                            # PyTorch/XLA 'same'
        layer_cfg.append((K, c_in, c_out, left))
        c_in = c_out
    n_layers = len(layer_cfg)
    c_last = layer_cfg[-1][2]

    max_left = max(cfg[3] for cfg in layer_cfg)
    max_right = max(cfg[0] - 1 - cfg[3] for cfg in layer_cfg)
    OFF = _round_up(max_left, SUBLANE_BF16)            # sublane-aligned interior
    Lp = _round_up(OFF + L + max_right, SUBLANE_BF16)
    scr_c = _round_up(max(cfg[1] for cfg in layer_cfg), LANE)

    d_model = params["ff_w"].shape[1]
    dm_pad = _round_up(d_model, LANE)                  # lane-dense output store

    # --- batch tiling: keep grid >= 2 so v7x's two TensorCores both work ----
    TB = max(1, min(tb, B))
    if pl.cdiv(B, TB) < 2 and B >= 2:
        TB = max(1, B // 2)
    nb = pl.cdiv(B, TB)
    B_pad = nb * TB
    if B_pad != B:
        x = jnp.pad(x, ((0, B_pad - B), (0, 0), (0, 0)))
    x = x.reshape(nb, TB, L, cin0)

    # --- operands / specs (weights kept at real widths; ff padded to dm_pad)
    operands = [x]
    in_specs = [pl.BlockSpec((None, TB, L, cin0), lambda bi: (bi, 0, 0, 0))]
    for (w, b), (K, c_i, c_o, _left) in zip(params["convs"], layer_cfg):
        operands += [w.astype(jnp.bfloat16),
                     b.reshape(1, c_o).astype(jnp.float32)]
        in_specs += [
            pl.BlockSpec((K, c_i, c_o), lambda bi: (0, 0, 0)),
            pl.BlockSpec((1, c_o), lambda bi: (0, 0)),
        ]
    wff_p = jnp.zeros((c_last, dm_pad), jnp.bfloat16)
    wff_p = wff_p.at[:, :d_model].set(params["ff_w"].astype(jnp.bfloat16))
    bff_p = jnp.zeros((1, dm_pad), jnp.float32)
    bff_p = bff_p.at[:, :d_model].set(
        params["ff_b"].reshape(1, -1).astype(jnp.float32))
    operands += [wff_p, bff_p]
    in_specs += [
        pl.BlockSpec((c_last, dm_pad), lambda bi: (0, 0)),
        pl.BlockSpec((1, dm_pad), lambda bi: (0, 0)),
    ]

    # --- scratch: bf16 ping-pong activations (1 buffer if single layer) -----
    n_bufs = 1 if n_layers == 1 else 2
    scratch = [pltpu.VMEM((TB, Lp, scr_c), jnp.bfloat16) for _ in range(n_bufs)]

    # --- explicit VMEM budget ------------------------------------------------
    scr_bytes = n_bufs * TB * Lp * scr_c * 2
    io_bytes = (2 * TB * _round_up(L, 8) * _round_up(cin0, LANE) * 4
                + 2 * _round_up(TB, 8) * dm_pad * 4)
    w_bytes = sum(2 * (K * _round_up(ci, 8) * _round_up(co, LANE) * 2
                       + 8 * _round_up(co, LANE) * 4)
                  for (K, ci, co, _l) in layer_cfg)
    w_bytes += 2 * (_round_up(c_last, 8) * dm_pad * 2 + 8 * dm_pad * 4)
    need = scr_bytes + io_bytes + w_bytes
    vmem_bytes = min(max(int(1.5 * need) + (4 << 20), 32 << 20), 100 << 20)

    kernel = functools.partial(
        _fused_encoder_kernel,
        layers=tuple(layer_cfg), L=L, OFF=OFF, Lp=Lp, TB=TB, n_bufs=n_bufs,
        neg_slope=neg_slope)

    out_p = pl.pallas_call(
        kernel,
        out_shape=jax.ShapeDtypeStruct((nb, TB, dm_pad), jnp.float32),
        grid=(nb,),
        in_specs=in_specs,
        out_specs=pl.BlockSpec((None, TB, dm_pad), lambda bi: (bi, 0, 0)),
        scratch_shapes=scratch,
        compiler_params=pltpu.CompilerParams(
            dimension_semantics=("parallel",),
            vmem_limit_bytes=vmem_bytes),
    )(*operands)

    out = out_p.reshape(B_pad, dm_pad)[:B, :d_model]
    return out.astype(x_ncl.dtype)


# ---------------------------------------------------------------------------
# Parameter init (channels-last weight storage: conv (K, Cin, Cout), ff (Cin, Dm)).
# ---------------------------------------------------------------------------
def init_params(key, d_input, conv_outs, conv_kernels, d_model):
    params = {"convs": []}
    c_in = d_input
    for out, k in zip(conv_outs, conv_kernels):
        key, kw, kb = jax.random.split(key, 3)
        w = 0.1 * jax.random.normal(kw, (k, c_in, out), jnp.float32)
        b = 0.1 * jax.random.normal(kb, (1, out), jnp.float32)
        params["convs"].append((w, b))
        c_in = out
    key, kw, kb = jax.random.split(key, 3)
    params["ff_w"] = 0.1 * jax.random.normal(kw, (c_in, d_model), jnp.float32)
    params["ff_b"] = 0.1 * jax.random.normal(kb, (1, d_model), jnp.float32)
    return params


# ---------------------------------------------------------------------------
# Pure-JAX f32 reference (sanity check only).
# ---------------------------------------------------------------------------
def conv_encoder_reference(x_ncl, params, negative_slope=NEG_SLOPE):
    h = x_ncl                                            # (B, C, L)
    for (w, b) in params["convs"]:
        w_oiw = jnp.transpose(w, (2, 1, 0))              # (Cout, Cin, K)
        h = jax.lax.conv_general_dilated(
            h, w_oiw, window_strides=(1,), padding="SAME",
            dimension_numbers=("NCW", "OIW", "NCW"))
        h = h + b[0][None, :, None]
        h = jnp.where(h >= 0, h, negative_slope * h)
    pooled = jnp.max(h, axis=2)                          # (B, C_last)
    return pooled @ params["ff_w"] + params["ff_b"]


if __name__ == "__main__":
    B, d_input, L = 2, 4, 16
    conv_outs = [8, 16]
    conv_kernels = [3, 3]
    d_model = 32

    key = jax.random.PRNGKey(0)
    key, kx = jax.random.split(key)
    x = jax.random.normal(kx, (B, d_input, L), jnp.float32)  # PyTorch NCL input

    params = init_params(key, d_input, conv_outs, conv_kernels, d_model)

    out = conv_encoder_forward(x, params)
    out = jax.block_until_ready(out)
    assert out.shape == (B, d_model), out.shape

    ref = conv_encoder_reference(x, params)
    # bf16 MXU operands / bf16 inter-layer activations with f32 accumulation:
    # comfortably within 2e-2 of the f32 reference.
    assert jnp.allclose(out, ref, atol=2e-2, rtol=2e-2), (
        float(jnp.max(jnp.abs(out - ref))))

    print("KERNEL_OK")
</pallas_src>

<mosaic_0001>
module attributes {stable_mosaic.version = 11 : i64} {
  func.func @_fused_encoder_kernel(%arg0: i32, %arg1: memref<1x1x16x4xf32, #tpu.memory_space<vmem>>, %arg2: memref<3x4x8xbf16, #tpu.memory_space<vmem>>, %arg3: memref<1x8xf32, #tpu.memory_space<vmem>>, %arg4: memref<3x8x16xbf16, #tpu.memory_space<vmem>>, %arg5: memref<1x16xf32, #tpu.memory_space<vmem>>, %arg6: memref<16x128xbf16, #tpu.memory_space<vmem>>, %arg7: memref<1x128xf32, #tpu.memory_space<vmem>>, %arg8: memref<1x1x128xf32, #tpu.memory_space<vmem>>, %arg9: memref<1x48x128xbf16, #tpu.memory_space<vmem>>, %arg10: memref<1x48x128xbf16, #tpu.memory_space<vmem>>) attributes {dimension_semantics = [#tpu.dimension_semantics<parallel>], iteration_bounds = array<i64: 2>, scalar_prefetch = 0 : i64, scratch_operands = 2 : i64, tpu.core_type = #tpu.core_type<tc>, window_params = [{transform_indices = @transform_0, window_bounds = array<i64: 1, 1, 16, 4>}, {pipeline_mode = #tpu.pipeline_mode<synchronous>, transform_indices = @transform_1, window_bounds = array<i64: 3, 4, 8>}, {pipeline_mode = #tpu.pipeline_mode<synchronous>, transform_indices = @transform_2, window_bounds = array<i64: 1, 8>}, {pipeline_mode = #tpu.pipeline_mode<synchronous>, transform_indices = @transform_3, window_bounds = array<i64: 3, 8, 16>}, {pipeline_mode = #tpu.pipeline_mode<synchronous>, transform_indices = @transform_4, window_bounds = array<i64: 1, 16>}, {pipeline_mode = #tpu.pipeline_mode<synchronous>, transform_indices = @transform_5, window_bounds = array<i64: 16, 128>}, {pipeline_mode = #tpu.pipeline_mode<synchronous>, transform_indices = @transform_6, window_bounds = array<i64: 1, 128>}, {transform_indices = @transform_7, window_bounds = array<i64: 1, 1, 128>}]} {
    %cst = arith.constant 0.000000e+00 : bf16
    %0 = vector.broadcast %cst : bf16 to vector<1x16x128xbf16>
    %c0 = arith.constant 0 : index
    %c0_0 = arith.constant 0 : index
    %c0_1 = arith.constant 0 : index
    %1 = vector.load %arg9[%c0, %c0_0, %c0_1] : memref<1x48x128xbf16, #tpu.memory_space<vmem>>, vector<1x16x128xbf16>
    tpu.vector_store %arg9[%c0, %c0_0, %c0_1], %0 {strides = array<i32>} : memref<1x48x128xbf16, #tpu.memory_space<vmem>>, vector<1x16x128xbf16>,
    %cst_2 = arith.constant 0.000000e+00 : bf16
    %2 = vector.broadcast %cst_2 : bf16 to vector<1x16x128xbf16>
    %c0_3 = arith.constant 0 : index
    %c32 = arith.constant 32 : index
    %c0_4 = arith.constant 0 : index
    %3 = vector.load %arg9[%c0_3, %c32, %c0_4] : memref<1x48x128xbf16, #tpu.memory_space<vmem>>, vector<1x16x128xbf16>
    tpu.vector_store %arg9[%c0_3, %c32, %c0_4], %2 {strides = array<i32>} : memref<1x48x128xbf16, #tpu.memory_space<vmem>>, vector<1x16x128xbf16>,
    %cst_5 = arith.constant 0.000000e+00 : bf16
    %4 = vector.broadcast %cst_5 : bf16 to vector<1x16x128xbf16>
    %c0_6 = arith.constant 0 : index
    %c0_7 = arith.constant 0 : index
    %c0_8 = arith.constant 0 : index
    %5 = vector.load %arg10[%c0_6, %c0_7, %c0_8] : memref<1x48x128xbf16, #tpu.memory_space<vmem>>, vector<1x16x128xbf16>
    tpu.vector_store %arg10[%c0_6, %c0_7, %c0_8], %4 {strides = array<i32>} : memref<1x48x128xbf16, #tpu.memory_space<vmem>>, vector<1x16x128xbf16>,
    %cst_9 = arith.constant 0.000000e+00 : bf16
    %6 = vector.broadcast %cst_9 : bf16 to vector<1x16x128xbf16>
    %c0_10 = arith.constant 0 : index
    %c32_11 = arith.constant 32 : index
    %c0_12 = arith.constant 0 : index
    %7 = vector.load %arg10[%c0_10, %c32_11, %c0_12] : memref<1x48x128xbf16, #tpu.memory_space<vmem>>, vector<1x16x128xbf16>
    tpu.vector_store %arg10[%c0_10, %c32_11, %c0_12], %6 {strides = array<i32>} : memref<1x48x128xbf16, #tpu.memory_space<vmem>>, vector<1x16x128xbf16>,
    %c0_13 = arith.constant 0 : index
    %c0_14 = arith.constant 0 : index
    %c0_15 = arith.constant 0 : index
    %c0_16 = arith.constant 0 : index
    %8 = vector.load %arg1[%c0_13, %c0_14, %c0_15, %c0_16] : memref<1x1x16x4xf32, #tpu.memory_space<vmem>>, vector<1x1x16x4xf32>
    %9 = vector.shape_cast %8 : vector<1x1x16x4xf32> to vector<1x16x4xf32>
    %10 = arith.truncf %9 : vector<1x16x4xf32> to vector<1x16x4xbf16>
    %c0_17 = arith.constant 0 : index
    %c16 = arith.constant 16 : index
    %c0_18 = arith.constant 0 : index
    %11 = vector.load %arg9[%c0_17, %c16, %c0_18] : memref<1x48x128xbf16, #tpu.memory_space<vmem>>, vector<1x16x4xbf16>
    tpu.vector_store %arg9[%c0_17, %c16, %c0_18], %10 {strides = array<i32>} : memref<1x48x128xbf16, #tpu.memory_space<vmem>>, vector<1x16x4xbf16>,
    %cst_19 = arith.constant 0.000000e+00 : f32
    %12 = vector.broadcast %cst_19 : f32 to vector<16x8xf32>
    %c0_20 = arith.constant 0 : index
    %c15 = arith.constant 15 : index
    %c0_21 = arith.constant 0 : index
    %13 = vector.load %arg9[%c0_20, %c15, %c0_21] : memref<1x48x128xbf16, #tpu.memory_space<vmem>>, vector<1x16x4xbf16>
    %14 = vector.shape_cast %13 : vector<1x16x4xbf16> to vector<16x4xbf16>
    %c0_22 = arith.constant 0 : index
    %c0_23 = arith.constant 0 : index
    %c0_24 = arith.constant 0 : index
    %15 = vector.load %arg2[%c0_22, %c0_23, %c0_24] : memref<3x4x8xbf16, #tpu.memory_space<vmem>>, vector<1x4x8xbf16>
    %16 = vector.shape_cast %15 : vector<1x4x8xbf16> to vector<4x8xbf16>
    %cst_25 = arith.constant dense<0.000000e+00> : vector<16x8xf32>
    %17 = tpu.matmul %14, %16, %cst_25 {dimension_numbers = #tpu.dot_dimension_numbers<[1], [0], [0], [1], [0, 0, 1, 1], [], []>} : vector<16x4xbf16>, vector<4x8xbf16>, vector<16x8xf32> -> vector<16x8xf32>
    %18 = arith.addf %12, %17 : vector<16x8xf32>
    %c0_26 = arith.constant 0 : index
    %c16_27 = arith.constant 16 : index
    %c0_28 = arith.constant 0 : index
    %19 = vector.load %arg9[%c0_26, %c16_27, %c0_28] : memref<1x48x128xbf16, #tpu.memory_space<vmem>>, vector<1x16x4xbf16>
    %20 = vector.shape_cast %19 : vector<1x16x4xbf16> to vector<16x4xbf16>
    %c1 = arith.constant 1 : index
    %c0_29 = arith.constant 0 : index
    %c0_30 = arith.constant 0 : index
    %21 = vector.load %arg2[%c1, %c0_29, %c0_30] : memref<3x4x8xbf16, #tpu.memory_space<vmem>>, vector<1x4x8xbf16>
    %22 = vector.shape_cast %21 : vector<1x4x8xbf16> to vector<4x8xbf16>
    %cst_31 = arith.constant dense<0.000000e+00> : vector<16x8xf32>
    %23 = tpu.matmul %20, %22, %cst_31 {dimension_numbers = #tpu.dot_dimension_numbers<[1], [0], [0], [1], [0, 0, 1, 1], [], []>} : vector<16x4xbf16>, vector<4x8xbf16>, vector<16x8xf32> -> vector<16x8xf32>
    %24 = arith.addf %18, %23 : vector<16x8xf32>
    %c0_32 = arith.constant 0 : index
    %c17 = arith.constant 17 : index
    %c0_33 = arith.constant 0 : index
    %25 = vector.load %arg9[%c0_32, %c17, %c0_33] : memref<1x48x128xbf16, #tpu.memory_space<vmem>>, vector<1x16x4xbf16>
    %26 = vector.shape_cast %25 : vector<1x16x4xbf16> to vector<16x4xbf16>
    %c2 = arith.constant 2 : index
    %c0_34 = arith.constant 0 : index
    %c0_35 = arith.constant 0 : index
    %27 = vector.load %arg2[%c2, %c0_34, %c0_35] : memref<3x4x8xbf16, #tpu.memory_space<vmem>>, vector<1x4x8xbf16>
    %28 = vector.shape_cast %27 : vector<1x4x8xbf16> to vector<4x8xbf16>
    %cst_36 = arith.constant dense<0.000000e+00> : vector<16x8xf32>
    %29 = tpu.matmul %26, %28, %cst_36 {dimension_numbers = #tpu.dot_dimension_numbers<[1], [0], [0], [1], [0, 0, 1, 1], [], []>} : vector<16x4xbf16>, vector<4x8xbf16>, vector<16x8xf32> -> vector<16x8xf32>
    %30 = arith.addf %24, %29 : vector<16x8xf32>
    %c0_37 = arith.constant 0 : index
    %c0_38 = arith.constant 0 : index
    %31 = vector.load %arg3[%c0_37, %c0_38] : memref<1x8xf32, #tpu.memory_space<vmem>>, vector<1x8xf32>
    %32 = vector.broadcast %31 : vector<1x8xf32> to vector<16x8xf32>
    %33 = arith.addf %30, %32 : vector<16x8xf32>
    %cst_39 = arith.constant 0.000000e+00 : f32
    %34 = vector.broadcast %cst_39 : f32 to vector<16x8xf32>
    %35 = arith.cmpf oge, %33, %34 : vector<16x8xf32>
    %cst_40 = arith.constant 0.00999999977 : f32
    %36 = vector.broadcast %cst_40 : f32 to vector<16x8xf32>
    %37 = arith.mulf %36, %33 : vector<16x8xf32>
    %38 = arith.select %35, %33, %37 : vector<16x8xi1>, vector<16x8xf32>
    %39 = vector.shape_cast %38 : vector<16x8xf32> to vector<1x16x8xf32>
    %40 = arith.truncf %39 : vector<1x16x8xf32> to vector<1x16x8xbf16>
    %c0_41 = arith.constant 0 : index
    %c16_42 = arith.constant 16 : index
    %c0_43 = arith.constant 0 : index
    %41 = vector.load %arg10[%c0_41, %c16_42, %c0_43] : memref<1x48x128xbf16, #tpu.memory_space<vmem>>, vector<1x16x8xbf16>
    tpu.vector_store %arg10[%c0_41, %c16_42, %c0_43], %40 {strides = array<i32>} : memref<1x48x128xbf16, #tpu.memory_space<vmem>>, vector<1x16x8xbf16>,
    %cst_44 = arith.constant 0.000000e+00 : f32
    %42 = vector.broadcast %cst_44 : f32 to vector<16x16xf32>
    %c0_45 = arith.constant 0 : index
    %c15_46 = arith.constant 15 : index
    %c0_47 = arith.constant 0 : index
    %43 = vector.load %arg10[%c0_45, %c15_46, %c0_47] : memref<1x48x128xbf16, #tpu.memory_space<vmem>>, vector<1x16x8xbf16>
    %44 = vector.shape_cast %43 : vector<1x16x8xbf16> to vector<16x8xbf16>
    %c0_48 = arith.constant 0 : index
    %c0_49 = arith.constant 0 : index
    %c0_50 = arith.constant 0 : index
    %45 = vector.load %arg4[%c0_48, %c0_49, %c0_50] : memref<3x8x16xbf16, #tpu.memory_space<vmem>>, vector<1x8x16xbf16>
    %46 = vector.shape_cast %45 : vector<1x8x16xbf16> to vector<8x16xbf16>
    %cst_51 = arith.constant dense<0.000000e+00> : vector<16x16xf32>
    %47 = tpu.matmul %44, %46, %cst_51 {dimension_numbers = #tpu.dot_dimension_numbers<[1], [0], [0], [1], [0, 0, 1, 1], [], []>} : vector<16x8xbf16>, vector<8x16xbf16>, vector<16x16xf32> -> vector<16x16xf32>
    %48 = arith.addf %42, %47 : vector<16x16xf32>
    %c0_52 = arith.constant 0 : index
    %c16_53 = arith.constant 16 : index
    %c0_54 = arith.constant 0 : index
    %49 = vector.load %arg10[%c0_52, %c16_53, %c0_54] : memref<1x48x128xbf16, #tpu.memory_space<vmem>>, vector<1x16x8xbf16>
    %50 = vector.shape_cast %49 : vector<1x16x8xbf16> to vector<16x8xbf16>
    %c1_55 = arith.constant 1 : index
    %c0_56 = arith.constant 0 : index
    %c0_57 = arith.constant 0 : index
    %51 = vector.load %arg4[%c1_55, %c0_56, %c0_57] : memref<3x8x16xbf16, #tpu.memory_space<vmem>>, vector<1x8x16xbf16>
    %52 = vector.shape_cast %51 : vector<1x8x16xbf16> to vector<8x16xbf16>
    %cst_58 = arith.constant dense<0.000000e+00> : vector<16x16xf32>
    %53 = tpu.matmul %50, %52, %cst_58 {dimension_numbers = #tpu.dot_dimension_numbers<[1], [0], [0], [1], [0, 0, 1, 1], [], []>} : vector<16x8xbf16>, vector<8x16xbf16>, vector<16x16xf32> -> vector<16x16xf32>
    %54 = arith.addf %48, %53 : vector<16x16xf32>
    %c0_59 = arith.constant 0 : index
    %c17_60 = arith.constant 17 : index
    %c0_61 = arith.constant 0 : index
    %55 = vector.load %arg10[%c0_59, %c17_60, %c0_61] : memref<1x48x128xbf16, #tpu.memory_space<vmem>>, vector<1x16x8xbf16>
    %56 = vector.shape_cast %55 : vector<1x16x8xbf16> to vector<16x8xbf16>
    %c2_62 = arith.constant 2 : index
    %c0_63 = arith.constant 0 : index
    %c0_64 = arith.constant 0 : index
    %57 = vector.load %arg4[%c2_62, %c0_63, %c0_64] : memref<3x8x16xbf16, #tpu.memory_space<vmem>>, vector<1x8x16xbf16>
    %58 = vector.shape_cast %57 : vector<1x8x16xbf16> to vector<8x16xbf16>
    %cst_65 = arith.constant dense<0.000000e+00> : vector<16x16xf32>
    %59 = tpu.matmul %56, %58, %cst_65 {dimension_numbers = #tpu.dot_dimension_numbers<[1], [0], [0], [1], [0, 0, 1, 1], [], []>} : vector<16x8xbf16>, vector<8x16xbf16>, vector<16x16xf32> -> vector<16x16xf32>
    %60 = arith.addf %54, %59 : vector<16x16xf32>
    %c0_66 = arith.constant 0 : index
    %c0_67 = arith.constant 0 : index
    %61 = vector.load %arg5[%c0_66, %c0_67] : memref<1x16xf32, #tpu.memory_space<vmem>>, vector<1x16xf32>
    %62 = vector.broadcast %61 : vector<1x16xf32> to vector<16x16xf32>
    %63 = arith.addf %60, %62 : vector<16x16xf32>
    %cst_68 = arith.constant 0.000000e+00 : f32
    %64 = vector.broadcast %cst_68 : f32 to vector<16x16xf32>
    %65 = arith.cmpf oge, %63, %64 : vector<16x16xf32>
    %cst_69 = arith.constant 0.00999999977 : f32
    %66 = vector.broadcast %cst_69 : f32 to vector<16x16xf32>
    %67 = arith.mulf %66, %63 : vector<16x16xf32>
    %68 = arith.select %65, %63, %67 : vector<16x16xi1>, vector<16x16xf32>
    %69 = vector.shape_cast %68 : vector<16x16xf32> to vector<1x16x16xf32>
    %cst_70 = arith.constant dense<0xFF800000> : vector<1x16xf32>
    %70 = vector.multi_reduction <maximumf>, %69, %cst_70 [1] : vector<1x16x16xf32> to vector<1x16xf32>
    %71 = arith.truncf %70 : vector<1x16xf32> to vector<1x16xbf16>
    %c0_71 = arith.constant 0 : index
    %c0_72 = arith.constant 0 : index
    %72 = vector.load %arg6[%c0_71, %c0_72] : memref<16x128xbf16, #tpu.memory_space<vmem>>, vector<16x128xbf16>
    %cst_73 = arith.constant dense<0.000000e+00> : vector<1x128xf32>
    %73 = tpu.matmul %71, %72, %cst_73 {dimension_numbers = #tpu.dot_dimension_numbers<[1], [0], [0], [1], [0, 0, 1, 1], [], []>} : vector<1x16xbf16>, vector<16x128xbf16>, vector<1x128xf32> -> vector<1x128xf32>
    %c0_74 = arith.constant 0 : index
    %c0_75 = arith.constant 0 : index
    %74 = vector.load %arg7[%c0_74, %c0_75] : memref<1x128xf32, #tpu.memory_space<vmem>>, vector<1x128xf32>
    %75 = arith.addf %73, %74 : vector<1x128xf32>
    %c0_76 = arith.constant 0 : index
    %c0_77 = arith.constant 0 : index
    %c0_78 = arith.constant 0 : index
    %76 = vector.load %arg8[%c0_76, %c0_77, %c0_78] : memref<1x1x128xf32, #tpu.memory_space<vmem>>, vector<1x1x128xf32>
    %77 = vector.shape_cast %76 : vector<1x1x128xf32> to vector<1x128xf32>
    %78 = vector.shape_cast %75 : vector<1x128xf32> to vector<1x1x128xf32>
    tpu.vector_store %arg8[%c0_76, %c0_77, %c0_78], %78 {strides = array<i32>} : memref<1x1x128xf32, #tpu.memory_space<vmem>>, vector<1x1x128xf32>,
    return
  }
  func.func @transform_0(%arg0: i32) -> (i32, i32, i32, i32) {
    %c0_i32 = arith.constant 0 : i32
    %c0_i32_0 = arith.constant 0 : i32
    %c0_i32_1 = arith.constant 0 : i32
    %c0_i32_2 = arith.constant 0 : i32
    return %arg0, %c0_i32, %c0_i32_0, %c0_i32_1 : i32, i32, i32, i32
  }
  func.func @transform_1(%arg0: i32) -> (i32, i32, i32) {
    %c0_i32 = arith.constant 0 : i32
    %c0_i32_0 = arith.constant 0 : i32
    %c0_i32_1 = arith.constant 0 : i32
    %c0_i32_2 = arith.constant 0 : i32
    return %c0_i32, %c0_i32_0, %c0_i32_1 : i32, i32, i32
  }
  func.func @transform_2(%arg0: i32) -> (i32, i32) {
    %c0_i32 = arith.constant 0 : i32
    %c0_i32_0 = arith.constant 0 : i32
    %c0_i32_1 = arith.constant 0 : i32
    return %c0_i32, %c0_i32_0 : i32, i32
  }
  func.func @transform_3(%arg0: i32) -> (i32, i32, i32) {
    %c0_i32 = arith.constant 0 : i32
    %c0_i32_0 = arith.constant 0 : i32
    %c0_i32_1 = arith.constant 0 : i32
    %c0_i32_2 = arith.constant 0 : i32
    return %c0_i32, %c0_i32_0, %c0_i32_1 : i32, i32, i32
  }
  func.func @transform_4(%arg0: i32) -> (i32, i32) {
    %c0_i32 = arith.constant 0 : i32
    %c0_i32_0 = arith.constant 0 : i32
    %c0_i32_1 = arith.constant 0 : i32
    return %c0_i32, %c0_i32_0 : i32, i32
  }
  func.func @transform_5(%arg0: i32) -> (i32, i32) {
    %c0_i32 = arith.constant 0 : i32
    %c0_i32_0 = arith.constant 0 : i32
    %c0_i32_1 = arith.constant 0 : i32
    return %c0_i32, %c0_i32_0 : i32, i32
  }
  func.func @transform_6(%arg0: i32) -> (i32, i32) {
    %c0_i32 = arith.constant 0 : i32
    %c0_i32_0 = arith.constant 0 : i32
    %c0_i32_1 = arith.constant 0 : i32
    return %c0_i32, %c0_i32_0 : i32, i32
  }
  func.func @transform_7(%arg0: i32) -> (i32, i32, i32) {
    %c0_i32 = arith.constant 0 : i32
    %c0_i32_0 = arith.constant 0 : i32
    %c0_i32_1 = arith.constant 0 : i32
    return %arg0, %c0_i32, %c0_i32_0 : i32, i32, i32
  }
}

</mosaic_0001>

<llo_original>
// kernel: tpu_custom_call.1
$region0: #{tpu_custom_call.1}
  #allocation0 [shape = 'u32[]', space=smem, size = 0x4, offset = 0x4, fixed_abs, tag = 'smem constant byte address 0x4 - core index']
  #allocation1 [shape = 'u32[144,128]{1,0:T(1,128)}', space=vmem, size = 0x12000, scoped, tag = 'internal scratch']
  #allocation2 [shape = 'bf16[1,48,128]{2,1,0:T(16,128)(2,1)}', space=vmem, size = 0x3000, scoped, tag = 'scratch operand']
  #allocation3 [shape = 'bf16[1,48,128]{2,1,0:T(16,128)(2,1)}', space=vmem, size = 0x3000, scoped, tag = 'scratch operand']
  %s0 = inlined_call_operand.vmem [shape: f32[2,1,16,4], index: 0, kind: input, shape index: {}]
  %s1 = inlined_call_operand.vmem [shape: bf16[3,4,8], index: 1, kind: input, shape index: {}]
  %s2 = inlined_call_operand.vmem [shape: f32[1,8], index: 2, kind: input, shape index: {}]
  %s3 = inlined_call_operand.vmem [shape: bf16[3,8,16], index: 3, kind: input, shape index: {}]
  %s4 = inlined_call_operand.vmem [shape: f32[1,16], index: 4, kind: input, shape index: {}]
  %s5 = inlined_call_operand.vmem [shape: bf16[16,128], index: 5, kind: input, shape index: {}]
  %s6 = inlined_call_operand.vmem [shape: f32[1,128], index: 6, kind: input, shape index: {}]
  %s7 = inlined_call_operand.hbm [shape: f32[2,1,128], index: 7, kind: output, shape index: {}]
  %s8 = sld [smem:[#allocation0]]
  $region61: #{tpu_custom_call.1} parent=0
    _
  %s10 = ssub.s32 1, %s8
  %s11 = scalar_select 0, %s10, %s8
  $region1: #{tpu_custom_call.1} parent=0
    #allocation4 [shape = 'u8[1024]{0}', space=vmem, size = 0x400, scoped, tag = 'output window, operand 0']
    #allocation5 [shape = 's32[2]{0}', space=sflag, size = 0x8, scoped, tag = 'scoped memory for tpu_custom_call.1']
    %12 = vsyncpa [#allocation5], 0
    %s13 = scalar_lea.sflag [#allocation5], 1
    %14 = vsyncpa %s13, 0
    loop: start=0, step=1, limit=4
    $region2: #{tpu_custom_call.1} parent=1 // loop_pre_header
      _
    $region3: #{tpu_custom_call.1} parent=1 // loop_header
      %s16 = sphi 0, %s20
      %p17 = scmp.ge.s32.totalorder %s16, 4
      %s26 = sphi 0, %s28
      %s29 = sphi 0, %s26
      %s30 = sphi 0, %s29
      %s46 = sphi 0, %s30
      %s50 = sphi 0, %s50
      %s52 = sphi 0, %s50
      %s53 = sphi 0, %s52
      %s67 = sphi 0, %s53
      %s71 = sphi 0, %s71
      %s73 = sphi 0, %s71
      %s74 = sphi 0, %s73
      %s88 = sphi 0, %s74
      %s92 = sphi 0, %s92
      %s94 = sphi 0, %s92
      %s95 = sphi 0, %s94
      %s109 = sphi 0, %s95
      %s113 = sphi 0, %s113
      %s115 = sphi 0, %s113
      %s116 = sphi 0, %s115
      %s130 = sphi 0, %s116
      %s134 = sphi 0, %s134
      %s136 = sphi 0, %s134
      %s137 = sphi 0, %s136
      %s151 = sphi 0, %s137
      %s155 = sphi 0, %s155
      %s157 = sphi 0, %s155
      %s158 = sphi 0, %s157
      %s172 = sphi 0, %s158
      %s178 = sphi 0, %s180
      %s181 = sphi 0, %s178
      %s182 = sphi 0, %s181
      %s198 = sphi 0, %s182
    $region4: #{tpu_custom_call.1} parent=1 // loop_header_branch
      %19 = sbr.rel (%p17) target = $region8
    $region5: #{tpu_custom_call.1} parent=1 // loop_body
      %s21 = ssub.s32 %s16, 1
      %s22 = ssub.s32 %s16, 2
      %s23 = sadd.s32 %s16, 1
      %s24 = ssub.s32 %s16, %s23
      %p25 = scmp.eq.s32.totalorder %s24, 0
      %s27 = sadd.s32 %s26, 1
      %s28 = scalar_select %p25, %s26, %s27
      %p31 = pneg %p25
      %p32 = scmp.eq.s32.totalorder %s16, 1
      %p33 = por %p31, %p32
      %p34 = scmp.ne.s32.totalorder %s26, %s29
      %p35 = scmp.eq.s32.totalorder %s16, 0
      %p36 = por %p34, %p35
      %p37 = scmp.ne.s32.totalorder %s26, %s29
      %p38 = scmp.eq.s32.totalorder %s21, 1
      %p39 = por %p37, %p38
      %p40 = scmp.ne.s32.totalorder %s29, %s30
      %p41 = scmp.eq.s32.totalorder %s21, 0
      %p42 = por %p40, %p41
      %p43 = scmp.ne.s32.totalorder %s29, %s30
      %p44 = scmp.eq.s32.totalorder %s22, 1
      %p45 = por %p43, %p44
      %p47 = scmp.ne.s32.totalorder %s30, %s46
      %p48 = scmp.eq.s32.totalorder %s22, 0
      %p49 = por %p47, %p48
      %s51 = sadd.s32 %s50, 1
      %p54 = scmp.eq.s32.totalorder %s16, 1
      %p55 = scmp.ne.s32.totalorder %s50, %s52
      %p56 = scmp.eq.s32.totalorder %s16, 0
      %p57 = por %p55, %p56
      %p58 = scmp.ne.s32.totalorder %s50, %s52
      %p59 = scmp.eq.s32.totalorder %s21, 1
      %p60 = por %p58, %p59
      %p61 = scmp.ne.s32.totalorder %s52, %s53
      %p62 = scmp.eq.s32.totalorder %s21, 0
      %p63 = por %p61, %p62
      %p64 = scmp.ne.s32.totalorder %s52, %s53
      %p65 = scmp.eq.s32.totalorder %s22, 1
      %p66 = por %p64, %p65
      %p68 = scmp.ne.s32.totalorder %s53, %s67
      %p69 = scmp.eq.s32.totalorder %s22, 0
      %p70 = por %p68, %p69
      %s72 = sadd.s32 %s71, 1
      %p75 = scmp.eq.s32.totalorder %s16, 1
      %p76 = scmp.ne.s32.totalorder %s71, %s73
      %p77 = scmp.eq.s32.totalorder %s16, 0
      %p78 = por %p76, %p77
      %p79 = scmp.ne.s32.totalorder %s71, %s73
      %p80 = scmp.eq.s32.totalorder %s21, 1
      %p81 = por %p79, %p80
      %p82 = scmp.ne.s32.totalorder %s73, %s74
      %p83 = scmp.eq.s32.totalorder %s21, 0
      %p84 = por %p82, %p83
      %p85 = scmp.ne.s32.totalorder %s73, %s74
      %p86 = scmp.eq.s32.totalorder %s22, 1
      %p87 = por %p85, %p86
      %p89 = scmp.ne.s32.totalorder %s74, %s88
      %p90 = scmp.eq.s32.totalorder %s22, 0
      %p91 = por %p89, %p90
      %s93 = sadd.s32 %s92, 1
      %p96 = scmp.eq.s32.totalorder %s16, 1
      %p97 = scmp.ne.s32.totalorder %s92, %s94
      %p98 = scmp.eq.s32.totalorder %s16, 0
      %p99 = por %p97, %p98
      %p100 = scmp.ne.s32.totalorder %s92, %s94
      %p101 = scmp.eq.s32.totalorder %s21, 1
      %p102 = por %p100, %p101
      %p103 = scmp.ne.s32.totalorder %s94, %s95
      %p104 = scmp.eq.s32.totalorder %s21, 0
      %p105 = por %p103, %p104
      %p106 = scmp.ne.s32.totalorder %s94, %s95
      %p107 = scmp.eq.s32.totalorder %s22, 1
      %p108 = por %p106, %p107
      %p110 = scmp.ne.s32.totalorder %s95, %s109
      %p111 = scmp.eq.s32.totalorder %s22, 0
      %p112 = por %p110, %p111
      %s114 = sadd.s32 %s113, 1
      %p117 = scmp.eq.s32.totalorder %s16, 1
      %p118 = scmp.ne.s32.totalorder %s113, %s115
      %p119 = scmp.eq.s32.totalorder %s16, 0
      %p120 = por %p118, %p119
      %p121 = scmp.ne.s32.totalorder %s113, %s115
      %p122 = scmp.eq.s32.totalorder %s21, 1
      %p123 = por %p121, %p122
      %p124 = scmp.ne.s32.totalorder %s115, %s116
      %p125 = scmp.eq.s32.totalorder %s21, 0
      %p126 = por %p124, %p125
      %p127 = scmp.ne.s32.totalorder %s115, %s116
      %p128 = scmp.eq.s32.totalorder %s22, 1
      %p129 = por %p127, %p128
      %p131 = scmp.ne.s32.totalorder %s116, %s130
      %p132 = scmp.eq.s32.totalorder %s22, 0
      %p133 = por %p131, %p132
      %s135 = sadd.s32 %s134, 1
      %p138 = scmp.eq.s32.totalorder %s16, 1
      %p139 = scmp.ne.s32.totalorder %s134, %s136
      %p140 = scmp.eq.s32.totalorder %s16, 0
      %p141 = por %p139, %p140
      %p142 = scmp.ne.s32.totalorder %s134, %s136
      %p143 = scmp.eq.s32.totalorder %s21, 1
      %p144 = por %p142, %p143
      %p145 = scmp.ne.s32.totalorder %s136, %s137
      %p146 = scmp.eq.s32.totalorder %s21, 0
      %p147 = por %p145, %p146
      %p148 = scmp.ne.s32.totalorder %s136, %s137
      %p149 = scmp.eq.s32.totalorder %s22, 1
      %p150 = por %p148, %p149
      %p152 = scmp.ne.s32.totalorder %s137, %s151
      %p153 = scmp.eq.s32.totalorder %s22, 0
      %p154 = por %p152, %p153
      %s156 = sadd.s32 %s155, 1
      %p159 = scmp.eq.s32.totalorder %s16, 1
      %p160 = scmp.ne.s32.totalorder %s155, %s157
      %p161 = scmp.eq.s32.totalorder %s16, 0
      %p162 = por %p160, %p161
      %p163 = scmp.ne.s32.totalorder %s155, %s157
      %p164 = scmp.eq.s32.totalorder %s21, 1
      %p165 = por %p163, %p164
      %p166 = scmp.ne.s32.totalorder %s157, %s158
      %p167 = scmp.eq.s32.totalorder %s21, 0
      %p168 = por %p166, %p167
      %p169 = scmp.ne.s32.totalorder %s157, %s158
      %p170 = scmp.eq.s32.totalorder %s22, 1
      %p171 = por %p169, %p170
      %p173 = scmp.ne.s32.totalorder %s158, %s172
      %p174 = scmp.eq.s32.totalorder %s22, 0
      %p175 = por %p173, %p174
      %s176 = ssub.s32 %s16, %s23
      %p177 = scmp.eq.s32.totalorder %s176, 0
      %s179 = sadd.s32 %s178, 1
      %s180 = scalar_select %p177, %s178, %s179
      %p183 = pneg %p177
      %p184 = scmp.eq.s32.totalorder %s16, 1
      %p185 = por %p183, %p184
      %p186 = scmp.ne.s32.totalorder %s178, %s181
      %p187 = scmp.eq.s32.totalorder %s16, 0
      %p188 = por %p186, %p187
      %p189 = scmp.ne.s32.totalorder %s178, %s181
      %p190 = scmp.eq.s32.totalorder %s21, 1
      %p191 = por %p189, %p190
      %p192 = scmp.ne.s32.totalorder %s181, %s182
      %p193 = scmp.eq.s32.totalorder %s21, 0
      %p194 = por %p192, %p193
      %p195 = scmp.ne.s32.totalorder %s181, %s182
      %p196 = scmp.eq.s32.totalorder %s22, 1
      %p197 = por %p195, %p196
      %p199 = scmp.ne.s32.totalorder %s182, %s198
      %p200 = scmp.eq.s32.totalorder %s22, 0
      %p201 = por %p199, %p200
      %p202 = scmp.le.s32.totalorder 1, %s16
      %p203 = scmp.lt.s32.totalorder %s16, 3
      %p204 = pnand %p202, %p203
      %p205 = pneg %p204
      // Predicated region
      $region9: #{tpu_custom_call.1} parent=5 // pred_check
        _
      $region10: #{tpu_custom_call.1} parent=5 // pred_check_branch
        %207 = sbr.rel (%p204) target = $region12
      $region11: #{tpu_custom_call.1} parent=5 // pred_region
        %s208 = ssub.s32 %s16, 1
        // Predicated region
        $region13: #{tpu_custom_call.1} parent=11 // pred_check
          %p209 = pneg %p63
        $region14: #{tpu_custom_call.1} parent=11 // pred_check_branch
          %211 = sbr.rel (%p209) target = $region16
        $region15: #{tpu_custom_call.1} parent=11 // pred_region
          _
        $region16: #{tpu_custom_call.1} parent=11 // pred_fallthru
          _
        // Predicated region
        $region17: #{tpu_custom_call.1} parent=11 // pred_check
          %p212 = pneg %p84
        $region18: #{tpu_custom_call.1} parent=11 // pred_check_branch
          %214 = sbr.rel (%p212) target = $region20
        $region19: #{tpu_custom_call.1} parent=11 // pred_region
          _
        $region20: #{tpu_custom_call.1} parent=11 // pred_fallthru
          _
        // Predicated region
        $region21: #{tpu_custom_call.1} parent=11 // pred_check
          %p215 = pneg %p105
        $region22: #{tpu_custom_call.1} parent=11 // pred_check_branch
          %217 = sbr.rel (%p215) target = $region24
        $region23: #{tpu_custom_call.1} parent=11 // pred_region
          _
        $region24: #{tpu_custom_call.1} parent=11 // pred_fallthru
          _
        // Predicated region
        $region25: #{tpu_custom_call.1} parent=11 // pred_check
          %p218 = pneg %p126
        $region26: #{tpu_custom_call.1} parent=11 // pred_check_branch
          %220 = sbr.rel (%p218) target = $region28
        $region27: #{tpu_custom_call.1} parent=11 // pred_region
          _
        $region28: #{tpu_custom_call.1} parent=11 // pred_fallthru
          _
        // Predicated region
        $region29: #{tpu_custom_call.1} parent=11 // pred_check
          %p221 = pneg %p147
        $region30: #{tpu_custom_call.1} parent=11 // pred_check_branch
          %223 = sbr.rel (%p221) target = $region32
        $region31: #{tpu_custom_call.1} parent=11 // pred_region
          _
        $region32: #{tpu_custom_call.1} parent=11 // pred_fallthru
          _
        // Predicated region
        $region33: #{tpu_custom_call.1} parent=11 // pred_check
          %p224 = pneg %p168
        $region34: #{tpu_custom_call.1} parent=11 // pred_check_branch
          %226 = sbr.rel (%p224) target = $region36
        $region35: #{tpu_custom_call.1} parent=11 // pred_region
          _
        $region36: #{tpu_custom_call.1} parent=11 // pred_fallthru
          _
      $region12: #{tpu_custom_call.1} parent=5 // pred_fallthru
        _
      %p227 = scmp.lt.s32.totalorder %s16, 2
      // Predicated region
      $region37: #{tpu_custom_call.1} parent=5 // pred_check
        %p228 = pneg %p227
      $region38: #{tpu_custom_call.1} parent=5 // pred_check_branch
        %230 = sbr.rel (%p228) target = $region40
      $region39: #{tpu_custom_call.1} parent=5 // pred_region
        // Predicated region
        $region41: #{tpu_custom_call.1} parent=39 // pred_check
          %p231 = pneg %p36
        $region42: #{tpu_custom_call.1} parent=39 // pred_check_branch
          %233 = sbr.rel (%p231) target = $region44
        $region43: #{tpu_custom_call.1} parent=39 // pred_region
          %p234 = scmp.lt.s32.totalorder %s16, 1
          %s235 = scalar_select %p234, %s16, 1
          %s236 = smul.addr %s235, 2
          %s237 = smul.addr %s236, 8
          %s238 = scalar_lea.vmem %s0, %s237
        $region44: #{tpu_custom_call.1} parent=39 // pred_fallthru
          _
      $region40: #{tpu_custom_call.1} parent=5 // pred_fallthru
        _
      %p239 = scmp.le.s32.totalorder 1, %s16
      %p240 = scmp.lt.s32.totalorder %s16, 3
      %p241 = pnand %p239, %p240
      %p242 = pneg %p241
      // Predicated region
      $region45: #{tpu_custom_call.1} parent=5 // pred_check
        _
      $region46: #{tpu_custom_call.1} parent=5 // pred_check_branch
        %244 = sbr.rel (%p241) target = $region48
      $region47: #{tpu_custom_call.1} parent=5 // pred_region
        %s245 = ssub.s32 %s16, 1
        %p246 = scmp.lt.s32.totalorder %s21, 1
        %s247 = scalar_select %p246, %s21, 1
        %s248 = smul.addr %s247, 2
        %s249 = smul.addr %s248, 8
        %s250 = scalar_lea.vmem %s0, %s249
        %p251 = pneg %p42
        %p252 = pneg %p39
        %p253 = pneg %p63
        %p254 = pneg %p60
        %p255 = pneg %p84
        %p256 = pneg %p81
        %p257 = pneg %p105
        %p258 = pneg %p102
        %p259 = pneg %p126
        %p260 = pneg %p123
        %p261 = pneg %p147
        %p262 = pneg %p144
        %p263 = pneg %p168
        %p264 = pneg %p165
        %p265 = pneg %p194
        %p266 = pneg %p191
        %s267 = sand.u32 %s181, 1
        %s268 = scalar_lea.sflag [#allocation5], %s267
        %s269 = sand.u32 %s181, 1
        %s270 = scalar_lea.vmem [#allocation4], %s269
        %p271 = scmp.lt.s32.totalorder %s21, 1
        %s272 = scalar_select %p271, %s21, 1
        %s273 = smul.addr %s272, 2
        %s274 = smul.addr %s273, 8
        %s275 = scalar_lea.vmem %s0, %s274
        %277 = vst [vmem:[#allocation2] sm:$0xff] 0
        %278 = vst [vmem:[#allocation2 + $0x10] sm:$0xff] 0
        %279 = vst [vmem:[#allocation3] sm:$0xff] 0
        %280 = vst [vmem:[#allocation3 + $0x10] sm:$0xff] 0
        %v281 = vld [vmem:[%s275] sm:$0xff]
        %v282 = vld [vmem:[%s275 + $0x8] sm:$0xff]
        %v283 = vpack.c.bf16 %v282, %v281
        %vm284 = vcmask 31744
        %285 = vst.msk [vmem:[#allocation2 + $0x8] sm:$0xff] %vm284, %v283
        %v286 = vld [vmem:[#allocation2] sm:$0x80]
        %v287 = vld [vmem:[#allocation2 + $0x8] sm:$0xff]
        %v288 = vld [vmem:[%s1] sm:$0x3]
        %s289 = scalar_lea.vmem %s1, 2
        %v290 = vld [vmem:[%s289] sm:$0x3]
        %v292 = vsel %vm284, %v287, 0
        %vm294 = vcmask 1041408
        %v296 = vsel %vm294, %v290, 0
        %298 = vmatprep.subr.bf16.mxu0 0
        %299 = vmatpush1.bf16.msra.mxu0 %v296
        %300 = vmatprep.subr.bf16.mxu0 0
        %301 = vmatpush1.bf16.msra.mxu0 0
        %302 = vmatprep.subr.bf16.mxu0 0
        %303 = vmatpush1.bf16.msra.mxu0 0
        %304 = vmatprep.subr.bf16.mxu0 0
        %305 = vmatpush1.bf16.msra.mxu0 0
        %306 = vmatprep.subr.bf16.mxu0 0
        %307 = vmatpush1.bf16.msra.mxu0 0
        %308 = vmatprep.subr.bf16.mxu0 0
        %309 = vmatpush1.bf16.msra.mxu0 0
        %310 = vmatprep.subr.bf16.mxu0 0
        %311 = vmatpush1.bf16.msra.mxu0 0
        %312 = vmatprep.subr.bf16.mxu0 0
        %313 = vmatpush1.bf16.msra.mxu0 0
        %314 = vmatprep.subr.bf16.mxu0 0
        %315 = vmatpush1.bf16.msra.mxu0 0
        %316 = vmatprep.subr.bf16.mxu0 0
        %317 = vmatpush1.bf16.msra.mxu0 0
        %318 = vmatprep.subr.bf16.mxu0 0
        %319 = vmatpush1.bf16.msra.mxu0 0
        %320 = vmatprep.subr.bf16.mxu0 0
        %321 = vmatpush1.bf16.msra.mxu0 0
        %322 = vmatprep.subr.bf16.mxu0 0
        %323 = vmatpush1.bf16.msra.mxu0 0
        %324 = vmatprep.subr.bf16.mxu0 0
        %325 = vmatpush1.bf16.msra.mxu0 0
        %326 = vmatprep.subr.bf16.mxu0 0
        %327 = vmatpush1.bf16.msra.mxu0 0
        %328 = vmatprep.subr.bf16.mxu0 0
        %329 = vmatpush1.bf16.msra.mxu0 0
        %330 = vmatprep.mubr.bf16.mxu0 0
        %331 = vmatmul.mubr.bf16.gmra.mrb[0].mxu0 %v292
        %v332 = vpop.f32.mrb[0].mxu0
        %v333 = vadd.f32 0.0, %v332
        %v334 = vpop.f32.mrb[0].mxu0
        %v335 = vpop.f32.mrb[0].mxu0
        %v336 = vadd.f32 0.0, %v335
        %v337 = vpop.f32.mrb[0].mxu0
        %338 = vdwg.mxu0
        %vm339 = vsmask.f32 256
        %v341 = vshrl.u32 %v286, 16
        %v343 = vrot.slane %v341, 7
        %v344 = vshrl.u32 %v287, 16
        %v346 = vrot.slane %v344, 7
        %v347 = vshll.u32 %v287, 16
        %v349 = vor.u32 %v346, %v347
        %v350 = vsel %vm339, %v343, %v349
        %v352 = vsel %vm284, %v350, 0
        %v355 = vsel %vm294, %v288, 0
        %357 = vmatprep.subr.bf16.mxu0 0
        %358 = vmatpush1.bf16.msra.mxu0 %v355
        %359 = vmatprep.subr.bf16.mxu0 0
        %360 = vmatpush1.bf16.msra.mxu0 0
        %361 = vmatprep.subr.bf16.mxu0 0
        %362 = vmatpush1.bf16.msra.mxu0 0
        %363 = vmatprep.subr.bf16.mxu0 0
        %364 = vmatpush1.bf16.msra.mxu0 0
        %365 = vmatprep.subr.bf16.mxu0 0
        %366 = vmatpush1.bf16.msra.mxu0 0
        %367 = vmatprep.subr.bf16.mxu0 0
        %368 = vmatpush1.bf16.msra.mxu0 0
        %369 = vmatprep.subr.bf16.mxu0 0
        %370 = vmatpush1.bf16.msra.mxu0 0
        %371 = vmatprep.subr.bf16.mxu0 0
        %372 = vmatpush1.bf16.msra.mxu0 0
        %373 = vmatprep.subr.bf16.mxu0 0
        %374 = vmatpush1.bf16.msra.mxu0 0
        %375 = vmatprep.subr.bf16.mxu0 0
        %376 = vmatpush1.bf16.msra.mxu0 0
        %377 = vmatprep.subr.bf16.mxu0 0
        %378 = vmatpush1.bf16.msra.mxu0 0
        %379 = vmatprep.subr.bf16.mxu0 0
        %380 = vmatpush1.bf16.msra.mxu0 0
        %381 = vmatprep.subr.bf16.mxu0 0
        %382 = vmatpush1.bf16.msra.mxu0 0
        %383 = vmatprep.subr.bf16.mxu0 0
        %384 = vmatpush1.bf16.msra.mxu0 0
        %385 = vmatprep.subr.bf16.mxu0 0
        %386 = vmatpush1.bf16.msra.mxu0 0
        %387 = vmatprep.subr.bf16.mxu0 0
        %388 = vmatpush1.bf16.msra.mxu0 0
        %389 = vmatprep.mubr.bf16.mxu0 0
        %390 = vmatmul.mubr.bf16.gmra.mrb[0].mxu0 %v352
        %v391 = vpop.f32.mrb[0].mxu0
        %v392 = vadd.f32 %v333, %v391
        %v393 = vpop.f32.mrb[0].mxu0
        %v394 = vpop.f32.mrb[0].mxu0
        %v395 = vadd.f32 %v336, %v394
        %v396 = vpop.f32.mrb[0].mxu0
        %397 = vdwg.mxu0
        %v398 = vld [vmem:[#allocation2 + $0x8] sm:$0xff]
        %v399 = vld [vmem:[#allocation2 + $0x10] sm:$0x1]
        %s400 = scalar_lea.vmem %s1, 4
        %v401 = vld [vmem:[%s400] sm:$0x3]
        %vm402 = vsmask.f32 7424
        %v404 = vshrl.u32 %v398, 16
        %v406 = vshll.u32 %v398, 16
        %v408 = vrot.slane %v406, 1
        %v409 = vor.u32 %v404, %v408
        %v411 = vshll.u32 %v399, 16
        %v413 = vrot.slane %v411, 1
        %v414 = vsel %vm402, %v409, %v413
        %v416 = vsel %vm284, %v414, 0
        %v419 = vsel %vm294, %v401, 0
        %421 = vmatprep.subr.bf16.mxu0 0
        %422 = vmatpush1.bf16.msra.mxu0 %v419
        %423 = vmatprep.subr.bf16.mxu0 0
        %424 = vmatpush1.bf16.msra.mxu0 0
        %425 = vmatprep.subr.bf16.mxu0 0
        %426 = vmatpush1.bf16.msra.mxu0 0
        %427 = vmatprep.subr.bf16.mxu0 0
        %428 = vmatpush1.bf16.msra.mxu0 0
        %429 = vmatprep.subr.bf16.mxu0 0
        %430 = vmatpush1.bf16.msra.mxu0 0
        %431 = vmatprep.subr.bf16.mxu0 0
        %432 = vmatpush1.bf16.msra.mxu0 0
        %433 = vmatprep.subr.bf16.mxu0 0
        %434 = vmatpush1.bf16.msra.mxu0 0
        %435 = vmatprep.subr.bf16.mxu0 0
        %436 = vmatpush1.bf16.msra.mxu0 0
        %437 = vmatprep.subr.bf16.mxu0 0
        %438 = vmatpush1.bf16.msra.mxu0 0
        %439 = vmatprep.subr.bf16.mxu0 0
        %440 = vmatpush1.bf16.msra.mxu0 0
        %441 = vmatprep.subr.bf16.mxu0 0
        %442 = vmatpush1.bf16.msra.mxu0 0
        %443 = vmatprep.subr.bf16.mxu0 0
        %444 = vmatpush1.bf16.msra.mxu0 0
        %445 = vmatprep.subr.bf16.mxu0 0
        %446 = vmatpush1.bf16.msra.mxu0 0
        %447 = vmatprep.subr.bf16.mxu0 0
        %448 = vmatpush1.bf16.msra.mxu0 0
        %449 = vmatprep.subr.bf16.mxu0 0
        %450 = vmatpush1.bf16.msra.mxu0 0
        %451 = vmatprep.subr.bf16.mxu0 0
        %452 = vmatpush1.bf16.msra.mxu0 0
        %453 = vmatprep.mubr.bf16.mxu0 0
        %454 = vmatmul.mubr.bf16.gmra.mrb[0].mxu0 %v416
        %v455 = vpop.f32.mrb[0].mxu0
        %v456 = vadd.f32 0.0, %v455
        %v457 = vpop.f32.mrb[0].mxu0
        %v458 = vpop.f32.mrb[0].mxu0
        %v459 = vadd.f32 0.0, %v458
        %v460 = vpop.f32.mrb[0].mxu0
        %461 = vdwg.mxu0
        %v462 = vadd.f32 %v392, %v456
        %v463 = vadd.f32 %v395, %v459
        %v464 = vld [vmem:[%s2] sm:$0x1]
        %v466 = vlaneseq
        %v467 = vshrl.u32 %v466, 7
        %v468 = vsub.s32 0, %v467
        %v469 = vrot.slane %v464, %v468
        %v471 = vadd.f32 %v462, %v469
        %v472 = vadd.f32 %v463, %v469
        %vm473 = vcmp.ge.f32.partialorder %v471, 0.0
        %vm474 = vcmp.ge.f32.partialorder %v472, 0.0
        %v475 = vmul.f32 %v471, 0.01
        %v476 = vmul.f32 %v472, 0.01
        %v477 = vsel %vm473, %v471, %v475
        %v478 = vsel %vm474, %v472, %v476
        %v479 = vpack.c.bf16 %v478, %v477
        %vm480 = vcmask 64512
        %481 = vst.msk [vmem:[#allocation3 + $0x8] sm:$0xff] %vm480, %v479
        %v482 = vld [vmem:[#allocation3] sm:$0x80]
        %v483 = vld [vmem:[#allocation3 + $0x8] sm:$0xff]
        %v484 = vld [vmem:[%s3] sm:$0xf]
        %s485 = scalar_lea.vmem %s3, 4
        %v486 = vld [vmem:[%s485] sm:$0xf]
        %v488 = vsel %vm480, %v483, 0
        %vm490 = vcmask 1043456
        %v492 = vsel %vm490, %v486, 0
        %494 = vmatprep.subr.bf16.mxu0 0
        %495 = vmatpush1.bf16.msra.mxu0 %v492
        %496 = vmatprep.subr.bf16.mxu0 0
        %497 = vmatpush1.bf16.msra.mxu0 0
        %498 = vmatprep.subr.bf16.mxu0 0
        %499 = vmatpush1.bf16.msra.mxu0 0
        %500 = vmatprep.subr.bf16.mxu0 0
        %501 = vmatpush1.bf16.msra.mxu0 0
        %502 = vmatprep.subr.bf16.mxu0 0
        %503 = vmatpush1.bf16.msra.mxu0 0
        %504 = vmatprep.subr.bf16.mxu0 0
        %505 = vmatpush1.bf16.msra.mxu0 0
        %506 = vmatprep.subr.bf16.mxu0 0
        %507 = vmatpush1.bf16.msra.mxu0 0
        %508 = vmatprep.subr.bf16.mxu0 0
        %509 = vmatpush1.bf16.msra.mxu0 0
        %510 = vmatprep.subr.bf16.mxu0 0
        %511 = vmatpush1.bf16.msra.mxu0 0
        %512 = vmatprep.subr.bf16.mxu0 0
        %513 = vmatpush1.bf16.msra.mxu0 0
        %514 = vmatprep.subr.bf16.mxu0 0
        %515 = vmatpush1.bf16.msra.mxu0 0
        %516 = vmatprep.subr.bf16.mxu0 0
        %517 = vmatpush1.bf16.msra.mxu0 0
        %518 = vmatprep.subr.bf16.mxu0 0
        %519 = vmatpush1.bf16.msra.mxu0 0
        %520 = vmatprep.subr.bf16.mxu0 0
        %521 = vmatpush1.bf16.msra.mxu0 0
        %522 = vmatprep.subr.bf16.mxu0 0
        %523 = vmatpush1.bf16.msra.mxu0 0
        %524 = vmatprep.subr.bf16.mxu0 0
        %525 = vmatpush1.bf16.msra.mxu0 0
        %526 = vmatprep.mubr.bf16.mxu0 0
        %527 = vmatmul.mubr.bf16.gmra.mrb[0].mxu0 %v488
        %v528 = vpop.f32.mrb[0].mxu0
        %v529 = vadd.f32 0.0, %v528
        %v530 = vpop.f32.mrb[0].mxu0
        %v531 = vpop.f32.mrb[0].mxu0
        %v532 = vadd.f32 0.0, %v531
        %v533 = vpop.f32.mrb[0].mxu0
        %534 = vdwg.mxu0
        %v536 = vshrl.u32 %v482, 16
        %v538 = vrot.slane %v536, 7
        %v539 = vshrl.u32 %v483, 16
        %v541 = vrot.slane %v539, 7
        %v542 = vshll.u32 %v483, 16
        %v544 = vor.u32 %v541, %v542
        %v545 = vsel %vm339, %v538, %v544
        %v547 = vsel %vm480, %v545, 0
        %v550 = vsel %vm490, %v484, 0
        %552 = vmatprep.subr.bf16.mxu0 0
        %553 = vmatpush1.bf16.msra.mxu0 %v550
        %554 = vmatprep.subr.bf16.mxu0 0
        %555 = vmatpush1.bf16.msra.mxu0 0
        %556 = vmatprep.subr.bf16.mxu0 0
        %557 = vmatpush1.bf16.msra.mxu0 0
        %558 = vmatprep.subr.bf16.mxu0 0
        %559 = vmatpush1.bf16.msra.mxu0 0
        %560 = vmatprep.subr.bf16.mxu0 0
        %561 = vmatpush1.bf16.msra.mxu0 0
        %562 = vmatprep.subr.bf16.mxu0 0
        %563 = vmatpush1.bf16.msra.mxu0 0
        %564 = vmatprep.subr.bf16.mxu0 0
        %565 = vmatpush1.bf16.msra.mxu0 0
        %566 = vmatprep.subr.bf16.mxu0 0
        %567 = vmatpush1.bf16.msra.mxu0 0
        %568 = vmatprep.subr.bf16.mxu0 0
        %569 = vmatpush1.bf16.msra.mxu0 0
        %570 = vmatprep.subr.bf16.mxu0 0
        %571 = vmatpush1.bf16.msra.mxu0 0
        %572 = vmatprep.subr.bf16.mxu0 0
        %573 = vmatpush1.bf16.msra.mxu0 0
        %574 = vmatprep.subr.bf16.mxu0 0
        %575 = vmatpush1.bf16.msra.mxu0 0
        %576 = vmatprep.subr.bf16.mxu0 0
        %577 = vmatpush1.bf16.msra.mxu0 0
        %578 = vmatprep.subr.bf16.mxu0 0
        %579 = vmatpush1.bf16.msra.mxu0 0
        %580 = vmatprep.subr.bf16.mxu0 0
        %581 = vmatpush1.bf16.msra.mxu0 0
        %582 = vmatprep.subr.bf16.mxu0 0
        %583 = vmatpush1.bf16.msra.mxu0 0
        %584 = vmatprep.mubr.bf16.mxu0 0
        %585 = vmatmul.mubr.bf16.gmra.mrb[0].mxu0 %v547
        %v586 = vpop.f32.mrb[0].mxu0
        %v587 = vadd.f32 %v529, %v586
        %v588 = vpop.f32.mrb[0].mxu0
        %v589 = vpop.f32.mrb[0].mxu0
        %v590 = vadd.f32 %v532, %v589
        %v591 = vpop.f32.mrb[0].mxu0
        %592 = vdwg.mxu0
        %v593 = vld [vmem:[#allocation3 + $0x8] sm:$0xff]
        %v594 = vld [vmem:[#allocation3 + $0x10] sm:$0x1]
        %s595 = scalar_lea.vmem %s3, 8
        %v596 = vld [vmem:[%s595] sm:$0xf]
        %v598 = vshrl.u32 %v593, 16
        %v600 = vshll.u32 %v593, 16
        %v602 = vrot.slane %v600, 1
        %v603 = vor.u32 %v598, %v602
        %v605 = vshll.u32 %v594, 16
        %v607 = vrot.slane %v605, 1
        %v608 = vsel %vm402, %v603, %v607
        %v610 = vsel %vm480, %v608, 0
        %v613 = vsel %vm490, %v596, 0
        %615 = vmatprep.subr.bf16.mxu0 0
        %616 = vmatpush1.bf16.msra.mxu0 %v613
        %617 = vmatprep.subr.bf16.mxu0 0
        %618 = vmatpush1.bf16.msra.mxu0 0
        %619 = vmatprep.subr.bf16.mxu0 0
        %620 = vmatpush1.bf16.msra.mxu0 0
        %621 = vmatprep.subr.bf16.mxu0 0
        %622 = vmatpush1.bf16.msra.mxu0 0
        %623 = vmatprep.subr.bf16.mxu0 0
        %624 = vmatpush1.bf16.msra.mxu0 0
        %625 = vmatprep.subr.bf16.mxu0 0
        %626 = vmatpush1.bf16.msra.mxu0 0
        %627 = vmatprep.subr.bf16.mxu0 0
        %628 = vmatpush1.bf16.msra.mxu0 0
        %629 = vmatprep.subr.bf16.mxu0 0
        %630 = vmatpush1.bf16.msra.mxu0 0
        %631 = vmatprep.subr.bf16.mxu0 0
        %632 = vmatpush1.bf16.msra.mxu0 0
        %633 = vmatprep.subr.bf16.mxu0 0
        %634 = vmatpush1.bf16.msra.mxu0 0
        %635 = vmatprep.subr.bf16.mxu0 0
        %636 = vmatpush1.bf16.msra.mxu0 0
        %637 = vmatprep.subr.bf16.mxu0 0
        %638 = vmatpush1.bf16.msra.mxu0 0
        %639 = vmatprep.subr.bf16.mxu0 0
        %640 = vmatpush1.bf16.msra.mxu0 0
        %641 = vmatprep.subr.bf16.mxu0 0
        %642 = vmatpush1.bf16.msra.mxu0 0
        %643 = vmatprep.subr.bf16.mxu0 0
        %644 = vmatpush1.bf16.msra.mxu0 0
        %645 = vmatprep.subr.bf16.mxu0 0
        %646 = vmatpush1.bf16.msra.mxu0 0
        %647 = vmatprep.mubr.bf16.mxu0 0
        %648 = vmatmul.mubr.bf16.gmra.mrb[0].mxu0 %v610
        %v649 = vpop.f32.mrb[0].mxu0
        %v650 = vadd.f32 0.0, %v649
        %v651 = vpop.f32.mrb[0].mxu0
        %v652 = vpop.f32.mrb[0].mxu0
        %v653 = vadd.f32 0.0, %v652
        %v654 = vpop.f32.mrb[0].mxu0
        %655 = vdwg.mxu0
        %v656 = vadd.f32 %v587, %v650
        %v657 = vadd.f32 %v590, %v653
        %v658 = vld [vmem:[%s4] sm:$0x1]
        %v660 = vlaneseq
        %v661 = vshrl.u32 %v660, 7
        %v662 = vsub.s32 0, %v661
        %v663 = vrot.slane %v658, %v662
        %v665 = vadd.f32 %v656, %v663
        %v666 = vadd.f32 %v657, %v663
        %vm667 = vcmp.ge.f32.partialorder %v665, 0.0
        %vm668 = vcmp.ge.f32.partialorder %v666, 0.0
        %v669 = vmul.f32 %v665, 0.01
        %v670 = vmul.f32 %v666, 0.01
        %v671 = vsel %vm667, %v665, %v669
        %v672 = vsel %vm668, %v666, %v670
        %vm673 = vcmask 130048
        %v674 = vsel %vm673, %v671, -inf
        %v675 = vsel %vm673, %v672, -inf
        %v676 = vmax.f32 %v674, %v675
        %v677 = vrot.slane %v676, 4
        %v678 = vmax.f32 %v676, %v677
        %v679 = vrot.slane %v678, 2
        %v680 = vmax.f32 %v678, %v679
        %v681 = vrot.slane %v680, 1
        %v682 = vmax.f32 %v680, %v681
        %v683 = vpack.c.bf16 %v682, %v682
        %v684 = vld [vmem:[%s5] sm:$0xf]
        %v685 = vld [vmem:[%s5 + $0x4] sm:$0xf]
        %v686 = vld [vmem:[%s6] sm:$0x1]
        %v689 = vunpack.c.l.b16 %v684
        %v690 = vunpack.c.l.b16 %v685
        %v691 = vpack.c.b16 %v690, %v689
        %v694 = vsel %vm673, %v683, 0
        %696 = vmatprep.subr.bf16.mxu0 0
        %697 = vmatpush1.bf16.msra.mxu0 %v691
        %698 = vmatprep.subr.bf16.mxu0 0
        %699 = vmatpush1.bf16.msra.mxu0 0
        %700 = vmatprep.subr.bf16.mxu0 0
        %701 = vmatpush1.bf16.msra.mxu0 0
        %702 = vmatprep.subr.bf16.mxu0 0
        %703 = vmatpush1.bf16.msra.mxu0 0
        %704 = vmatprep.subr.bf16.mxu0 0
        %705 = vmatpush1.bf16.msra.mxu0 0
        %706 = vmatprep.subr.bf16.mxu0 0
        %707 = vmatpush1.bf16.msra.mxu0 0
        %708 = vmatprep.subr.bf16.mxu0 0
        %709 = vmatpush1.bf16.msra.mxu0 0
        %710 = vmatprep.subr.bf16.mxu0 0
        %711 = vmatpush1.bf16.msra.mxu0 0
        %712 = vmatprep.subr.bf16.mxu0 0
        %713 = vmatpush1.bf16.msra.mxu0 0
        %714 = vmatprep.subr.bf16.mxu0 0
        %715 = vmatpush1.bf16.msra.mxu0 0
        %716 = vmatprep.subr.bf16.mxu0 0
        %717 = vmatpush1.bf16.msra.mxu0 0
        %718 = vmatprep.subr.bf16.mxu0 0
        %719 = vmatpush1.bf16.msra.mxu0 0
        %720 = vmatprep.subr.bf16.mxu0 0
        %721 = vmatpush1.bf16.msra.mxu0 0
        %722 = vmatprep.subr.bf16.mxu0 0
        %723 = vmatpush1.bf16.msra.mxu0 0
        %724 = vmatprep.subr.bf16.mxu0 0
        %725 = vmatpush1.bf16.msra.mxu0 0
        %726 = vmatprep.subr.bf16.mxu0 0
        %727 = vmatpush1.bf16.msra.mxu0 0
        %728 = vmatprep.mubr.bf16.mxu0 0
        %729 = vmatmul.mubr.bf16.gmra.mrb[0].mxu0 %v694
        %v730 = vpop.f32.mrb[0].mxu0
        %v731 = vadd.f32 %v686, %v730
        %v732 = vpop.f32.mrb[0].mxu0
        %v733 = vpop.f32.mrb[0].mxu0
        %v734 = vpop.f32.mrb[0].mxu0
        %735 = vdwg.mxu0
        %736 = vst [vmem:[%s270] sm:$0x1] %v731
        %s737 = sand.u32 %s181, 1
        %s738 = scalar_lea.sflag [#allocation5], %s737
        %s739 = sand.u32 %s181, 1
        %s740 = scalar_lea.vmem [#allocation4], %s739
        // Predicated region
        $region49: #{tpu_custom_call.1} parent=47 // pred_check
          %p741 = pneg %p191
        $region50: #{tpu_custom_call.1} parent=47 // pred_check_branch
          %743 = sbr.rel (%p741) target = $region52
        $region51: #{tpu_custom_call.1} parent=47 // pred_region
          %s745 = ssub.s32 16, 16
          %746 = vsyncadd %s738, %s745
          %s747 = smul.addr %s21, 16
          %s748 = scalar_lea.hbm %s7, %s747
          %s750 = sshll.u32 %s740, 4
          %s751 = int_to_ptr.vmem [resolvable:$true] %s750
          %753 = dma.vmem_to_hbm [thread:$0]  %s751, 16, %s748, %s738
        $region52: #{tpu_custom_call.1} parent=47 // pred_fallthru
          _
      $region48: #{tpu_custom_call.1} parent=5 // pred_fallthru
        _
      %p754 = scmp.le.s32.totalorder 2, %s16
      // Predicated region
      $region53: #{tpu_custom_call.1} parent=5 // pred_check
        %p755 = pneg %p754
      $region54: #{tpu_custom_call.1} parent=5 // pred_check_branch
        %757 = sbr.rel (%p755) target = $region56
      $region55: #{tpu_custom_call.1} parent=5 // pred_region
        %s758 = ssub.s32 %s16, 2
        // Predicated region
        $region57: #{tpu_custom_call.1} parent=55 // pred_check
          %p759 = pneg %p197
        $region58: #{tpu_custom_call.1} parent=55 // pred_check_branch
          %761 = sbr.rel (%p759) target = $region60
        $region59: #{tpu_custom_call.1} parent=55 // pred_region
          %s762 = sand.u32 %s182, 1
          %s763 = scalar_lea.sflag [#allocation5], %s762
          %s764 = sand.u32 %s182, 1
          %s765 = scalar_lea.vmem [#allocation4], %s764
          %766 = dma.done %s763, 16
        $region60: #{tpu_custom_call.1} parent=55 // pred_fallthru
          _
      $region56: #{tpu_custom_call.1} parent=5 // pred_fallthru
        _
    $region6: #{tpu_custom_call.1} parent=1 // loop_footer
      %s20 = sadd.s32 1, %s16
    $region7: #{tpu_custom_call.1} parent=1 // loop_footer_branch
      %15 = sbr.rel target = $region3
    $region8: #{tpu_custom_call.1} parent=1 // loop_exit
      _
    %767 = vsyncpa [#allocation5], 1
    %s768 = scalar_lea.sflag [#allocation5], 1
    %769 = vsyncpa %s768, 1

</llo_original>
